<compile_context>
chip_gen: v5e
topology: v5e:2x2
jax: 0.10.0
libtpu: 0.0.40
codegen_flags: <defaults>
</compile_context>

<pallas_src>
import jax
import jax.numpy as jnp
from jax.experimental import pallas as pl
from jax.experimental.pallas import tpu as pltpu

LANES = 128


def _sigmoid_kernel(x_ref, o_ref):
    # Upcast to f32 (VPU cast, HBM traffic unchanged), one EUP transcendental.
    x = x_ref[...].astype(jnp.float32)
    o_ref[...] = (jnp.tanh(x * 0.5) * 0.5 + 0.5).astype(o_ref.dtype)


def _tpu_sizing():
    """Generation-aware (block_bytes, vmem_limit_bytes) with a safe fallback."""
    block_bytes = 4 << 20   # near HBM roofline on v5e/v6e already at >=1-4 MiB tiles
    vmem_limit = 24 << 20   # 2 specs x 2 buffers x 4 MiB = 16 MiB pipeline + slack
    try:
        info = pltpu.get_tpu_info()
        vmem_cap = getattr(info, "vmem_capacity_bytes", None)
        if vmem_cap is not None and vmem_cap <= (64 << 20):
            # v7x-class part (64 MiB VMEM, ~3.2 TB/s HBM): bigger blocks amortize
            # the fixed per-grid-step cost; 2x2x8 MiB = 32 MiB pipeline < 48 MiB.
            block_bytes = 8 << 20
            vmem_limit = 48 << 20
    except Exception:
        pass
    return block_bytes, vmem_limit


def pallas_sigmoid(x: jax.Array) -> jax.Array:
    """Elementwise sigmoid via a Pallas TPU kernel. Accepts any shape/float dtype."""
    orig_shape = x.shape
    dtype = x.dtype
    n = x.size
    if n == 0:
        return x

    itemsize = jnp.dtype(dtype).itemsize
    # Packed sublane tile for the dtype: 8 (f32), 16 (bf16/f16), 32 (int8/fp8).
    sublane = max(8, 32 // itemsize)

    x_flat = jnp.ravel(x)
    rows = n // LANES
    n_body = rows * LANES
    n_tail = n - n_body

    if rows == 0:
        # <128 elements total: a kernel launch is pure overhead.
        return jax.nn.sigmoid(x)

    body = x_flat.reshape(rows, LANES) if n_tail == 0 else x_flat[:n_body].reshape(rows, LANES)

    block_bytes, vmem_limit = _tpu_sizing()
    tr = max(sublane, (block_bytes // (LANES * itemsize)) // sublane * sublane)
    if tr >= rows:
        # Whole body fits in one block.  Split across two grid steps only when each
        # half (~>=1 MiB) amortizes the per-step cost (helps v7x's two TensorCores,
        # harmless single extra step elsewhere); tiny tensors stay one block.
        if rows * LANES * itemsize >= (2 << 20):
            half = (rows + 1) // 2
            tr = ((half + sublane - 1) // sublane) * sublane
        else:
            tr = rows  # block == full array, so (8,128) divisibility not required
    grid = pl.cdiv(rows, tr)  # partial final block is masked by Pallas

    out2d = pl.pallas_call(
        _sigmoid_kernel,
        out_shape=jax.ShapeDtypeStruct((rows, LANES), dtype),
        grid_spec=pltpu.PrefetchScalarGridSpec(
            num_scalar_prefetch=0,
            grid=(grid,),
            in_specs=[pl.BlockSpec((tr, LANES), lambda i: (i, 0))],
            out_specs=pl.BlockSpec((tr, LANES), lambda i: (i, 0)),
        ),
        compiler_params=pltpu.CompilerParams(
            dimension_semantics=("parallel",),
            vmem_limit_bytes=vmem_limit,
        ),
    )(body)

    out_flat = out2d.reshape(-1)
    if n_tail:
        # <=127-element tail in plain JAX; avoids pad/slice copies of the body.
        tail = jax.nn.sigmoid(x_flat[n_body:])
        out_flat = jnp.concatenate([out_flat, tail])
    return out_flat.reshape(orig_shape)


class Net:
    """JAX/Pallas equivalent of the PyTorch Net (Sigmoid only, no params)."""

    def __call__(self, x):
        return pallas_sigmoid(x)


if __name__ == "__main__":
    key = jax.random.PRNGKey(0)
    # small NCHW input consistent with a conv-style module: (N=2, C=4, H=16, W=16)
    x = jax.random.normal(key, (2, 4, 16, 16), dtype=jnp.float32)

    net = Net()
    y = net(x)
    y = jax.block_until_ready(y)

    # correctness check against plain JAX sigmoid
    y_ref = jax.nn.sigmoid(x)
    assert y.shape == x.shape and y.dtype == x.dtype
    assert jnp.max(jnp.abs(y - y_ref)) < 1e-5

    print("KERNEL_OK")
</pallas_src>

<mosaic_0001>
module attributes {stable_mosaic.version = 11 : i64} {
  func.func @_sigmoid_kernel(%arg0: i32, %arg1: memref<16x128xf32, #tpu.memory_space<vmem>>, %arg2: memref<16x128xf32, #tpu.memory_space<vmem>>) attributes {dimension_semantics = [#tpu.dimension_semantics<parallel>], iteration_bounds = array<i64: 1>, scalar_prefetch = 0 : i64, scratch_operands = 0 : i64, tpu.core_type = #tpu.core_type<tc>, window_params = [{transform_indices = @transform_0, window_bounds = array<i64: 16, 128>}, {transform_indices = @transform_1, window_bounds = array<i64: 16, 128>}]} {
    %c0 = arith.constant 0 : index
    %c0_0 = arith.constant 0 : index
    %0 = vector.load %arg1[%c0, %c0_0] : memref<16x128xf32, #tpu.memory_space<vmem>>, vector<16x128xf32>
    %cst = arith.constant 5.000000e-01 : f32
    %1 = vector.broadcast %cst : f32 to vector<16x128xf32>
    %2 = arith.mulf %0, %1 : vector<16x128xf32>
    %3 = math.tanh %2 : vector<16x128xf32>
    %cst_1 = arith.constant 5.000000e-01 : f32
    %4 = vector.broadcast %cst_1 : f32 to vector<16x128xf32>
    %5 = arith.mulf %3, %4 : vector<16x128xf32>
    %cst_2 = arith.constant 5.000000e-01 : f32
    %6 = vector.broadcast %cst_2 : f32 to vector<16x128xf32>
    %7 = arith.addf %5, %6 : vector<16x128xf32>
    %c0_3 = arith.constant 0 : index
    %c0_4 = arith.constant 0 : index
    %8 = vector.load %arg2[%c0_3, %c0_4] : memref<16x128xf32, #tpu.memory_space<vmem>>, vector<16x128xf32>
    tpu.vector_store %arg2[%c0_3, %c0_4], %7 {strides = array<i32>} : memref<16x128xf32, #tpu.memory_space<vmem>>, vector<16x128xf32>,
    return
  }
  func.func @transform_0(%arg0: i32) -> (i32, i32) {
    %c0_i32 = arith.constant 0 : i32
    %c0_i32_0 = arith.constant 0 : i32
    return %arg0, %c0_i32 : i32, i32
  }
  func.func @transform_1(%arg0: i32) -> (i32, i32) {
    %c0_i32 = arith.constant 0 : i32
    %c0_i32_0 = arith.constant 0 : i32
    return %arg0, %c0_i32 : i32, i32
  }
}

</mosaic_0001>

<llo_original>
// kernel: tpu_custom_call.1
$region0: #{tpu_custom_call.1}
  #allocation0 [shape = 'u32[]', space=smem, size = 0x4, offset = 0x4, fixed_abs, tag = 'smem constant byte address 0x4 - core index']
  #allocation1 [shape = 'u32[72,128]{1,0:T(1,128)}', space=vmem, size = 0x9000, scoped, tag = 'internal scratch']
  %s0 = inlined_call_operand.hbm [shape: f32[16,128], index: 0, kind: input, shape index: {}]
  %s1 = inlined_call_operand.hbm [shape: f32[16,128], index: 1, kind: output, shape index: {}]
  %s2 = sld [smem:[#allocation0]]
  $region18: #{tpu_custom_call.1} parent=0
    _
  %s4 = ssub.s32 1, %s2
  %s5 = scalar_select 0, %s4, %s2
  $region1: #{tpu_custom_call.1} parent=0
    #allocation2 [shape = 'u8[8192]{0}', space=vmem, size = 0x2000, scoped, tag = 'input window, operand 0, single buffered']
    #allocation3 [shape = 's32[1]{0}', space=sflag, size = 0x4, scoped, tag = 'scoped memory for tpu_custom_call.1']
    #allocation4 [shape = 's32[1]{0}', space=sflag, size = 0x4, scoped, tag = 'scoped memory for tpu_custom_call.1']
    #allocation5 [shape = 'u8[8192]{0}', space=vmem, size = 0x2000, scoped, tag = 'output window, operand 0, single buffered']
    %6 = vsyncpa [#allocation3], 0
    %7 = vsyncpa [#allocation4], 0
    // Predicated region
    $region2: #{tpu_custom_call.1} parent=1 // pred_check
      _
    $region3: #{tpu_custom_call.1} parent=1 // pred_check_branch
      %9 = sbr.rel (0) target = $region5
    $region4: #{tpu_custom_call.1} parent=1 // pred_region
      %11 = vsyncadd [#allocation3], 0
      %s12 = sshll.u32 %s0, 4
      %s13 = int_to_ptr.hbm [resolvable:$true] %s12
      %s14 = sshll.u32 [#allocation2], 4
      %s15 = int_to_ptr.vmem [resolvable:$true] %s14
      %20 = dma.hbm_to_vmem [thread:$0]  %s13, 256, %s15, [#allocation3], 128, 128, 8
    $region5: #{tpu_custom_call.1} parent=1 // pred_fallthru
      _
    // Predicated region
    $region6: #{tpu_custom_call.1} parent=1 // pred_check
      _
    $region7: #{tpu_custom_call.1} parent=1 // pred_check_branch
      %22 = sbr.rel (0) target = $region9
    $region8: #{tpu_custom_call.1} parent=1 // pred_region
      %24 = dma.done [#allocation3], 256
    $region9: #{tpu_custom_call.1} parent=1 // pred_fallthru
      _
    %v25 = vld [vmem:[#allocation2] sm:$0xff]
    %v26 = vld [vmem:[#allocation2 + $0x8] sm:$0xff]
    %v27 = vmul.f32 %v25, 0.5
    %v28 = vmul.f32 %v26, 0.5
    %v29 = vtanh.pop %v27
    %v30 = vtanh.pop %v28
    %v31 = vmul.f32 %v29, 0.5
    %v32 = vmul.f32 %v30, 0.5
    %v33 = vadd.f32 %v31, 0.5
    %v34 = vadd.f32 %v32, 0.5
    %35 = vst [vmem:[#allocation5] sm:$0xff] %v33
    %36 = vst [vmem:[#allocation5 + $0x8] sm:$0xff] %v34
    // Predicated region
    $region10: #{tpu_custom_call.1} parent=1 // pred_check
      _
    $region11: #{tpu_custom_call.1} parent=1 // pred_check_branch
      %38 = sbr.rel (0) target = $region13
    $region12: #{tpu_custom_call.1} parent=1 // pred_region
      %40 = vsyncadd [#allocation4], 0
      %s41 = sshll.u32 [#allocation5], 4
      %s42 = int_to_ptr.vmem [resolvable:$true] %s41
      %s43 = sshll.u32 %s1, 4
      %s44 = int_to_ptr.hbm [resolvable:$true] %s43
      %49 = dma.vmem_to_hbm [thread:$0]  %s42, 256, %s44, [#allocation4], 128, 128, 8
    $region13: #{tpu_custom_call.1} parent=1 // pred_fallthru
      _
    // Predicated region
    $region14: #{tpu_custom_call.1} parent=1 // pred_check
      _
    $region15: #{tpu_custom_call.1} parent=1 // pred_check_branch
      %51 = sbr.rel (0) target = $region17
    $region16: #{tpu_custom_call.1} parent=1 // pred_region
      %53 = dma.done [#allocation4], 256
    $region17: #{tpu_custom_call.1} parent=1 // pred_fallthru
      _
    %54 = vsyncpa [#allocation3], 1
    %55 = vsyncpa [#allocation4], 1

</llo_original>
